<compile_context>
chip_gen: v5e
topology: v5e:2x2
jax: 0.10.0
libtpu: 0.0.40
codegen_flags: <defaults>
</compile_context>

<pallas_src>
import functools

import jax
import jax.numpy as jnp
import numpy as np
from jax import lax
from jax.experimental import pallas as pl
from jax.experimental.pallas import tpu as pltpu


def _round_up(x: int, m: int) -> int:
    return ((x + m - 1) // m) * m


def _num_tensorcores() -> int:
    """2 on v7x-class chips (megacore), 1 otherwise. Defensive: default 1."""
    try:
        kind = jax.devices()[0].device_kind.lower()
        if "v7" in kind or "7x" in kind:
            return 2
    except Exception:
        pass
    return 1


def _vmem_limit_bytes() -> int:
    """Generation-aware scoped-VMEM limit: capacity minus 16 MiB headroom,
    capped at 112 MiB (v5e/v6e) -> 48 MiB on v7x's 64 MiB VMEM."""
    try:
        cap = int(pltpu.get_tpu_info().vmem_capacity_bytes)
    except Exception:
        cap = 64 * 1024 * 1024
    return int(max(32 * 1024 * 1024,
                   min(cap - 16 * 1024 * 1024, 112 * 1024 * 1024)))


def _choose_tiles(S: int):
    """(TQ, TK, S_pad): single 8-aligned tile for small S, 128-tiles otherwise."""
    if S <= 128:
        t = _round_up(max(S, 1), 8)
        return t, t, t
    return 128, 128, _round_up(S, 128)


def _choose_tb(B: int, tk: int, n_q_tiles: int, num_tc: int,
               target_rows: int = 256) -> int:
    """Batch elements per grid step. Fill ~target_rows MXU rows per K/V
    projection (TB*TK); only on multi-TensorCore chips require that the
    parallel grid axes still provide >= num_tc steps."""
    cap = max(1, target_rows // max(tk, 1))
    best = 1
    for d in range(1, B + 1):
        if B % d or d > cap:
            continue
        if num_tc > 1 and d > 1 and (B // d) * n_q_tiles < num_tc:
            continue
        best = d
    return best


def _flash_attn_kernel(*refs, mask_mode, inf, kv_len, kv_padded,
                       compute_dtype, approx_recip):
    if mask_mode == "tensor":
        (q_ref, k_ref, v_ref, mask_ref,
         wq_ref, bq_ref, wk_ref, bk_ref, wv_ref, bv_ref,
         out_ref, qp_sc, m_sc, l_sc, acc_sc) = refs
    else:
        (q_ref, k_ref, v_ref,
         wq_ref, bq_ref, wk_ref, bk_ref, wv_ref, bv_ref,
         out_ref, qp_sc, m_sc, l_sc, acc_sc) = refs
        mask_ref = None

    TB, TQ, dim_in = q_ref.shape
    TK = k_ref.shape[1]
    qi = pl.program_id(1)
    ki = pl.program_id(2)

    def project(x_ref, w_ref, b_ref, rows):
        # (TB, rows, dim_in) -> one (TB*rows, dim_in) MXU matmul; bias in f32,
        # result immediately narrowed to compute_dtype (halves VMEM footprint).
        x2 = x_ref[...].reshape(TB * rows, dim_in).astype(compute_dtype)
        y = jnp.dot(x2, w_ref[...], preferred_element_type=jnp.float32)
        y = y + b_ref[...]
        return y.reshape(TB, rows, -1).astype(compute_dtype)

    @pl.when(ki == 0)
    def _init():
        # Q projection once per (batch, q-tile); 1/sqrt(dim_q) already folded
        # into wq/bq by the wrapper.
        qp_sc[...] = project(q_ref, wq_ref, bq_ref, TQ)
        m_sc[...] = jnp.full_like(m_sc, -jnp.inf)
        l_sc[...] = jnp.zeros_like(l_sc)
        acc_sc[...] = jnp.zeros_like(acc_sc)

    k_proj = project(k_ref, wk_ref, bk_ref, TK)   # (TB, TK, dq_pad) bf16
    v_proj = project(v_ref, wv_ref, bv_ref, TK)   # (TB, TK, dv_pad) bf16

    # Q K^T contracting the last dim of both operands (no explicit transpose).
    s = jnp.einsum("bqd,bkd->bqk", qp_sc[...], k_proj,
                   preferred_element_type=jnp.float32)

    neg = jnp.float32(-inf)  # finite (-1e9) like torch masked_fill -> no NaN
    if mask_mode == "tensor":
        s = jnp.where(mask_ref[...] != 0, neg, s)
    elif mask_mode == "causal":
        row = qi * TQ + lax.broadcasted_iota(jnp.int32, (TB, TQ, TK), 1)
        col = ki * TK + lax.broadcasted_iota(jnp.int32, (TB, TQ, TK), 2)
        s = jnp.where(col > row, neg, s)

    if kv_padded:
        # Padded KV columns contribute exactly zero probability mass.
        col = ki * TK + lax.broadcasted_iota(jnp.int32, (TB, TQ, TK), 2)
        s = jnp.where(col >= kv_len, -jnp.inf, s)

    # Online softmax (f32): fully-masked real rows stay finite (-1e9) and give
    # a uniform distribution, matching torch.softmax semantics.
    m_prev = m_sc[...]
    m_new = jnp.maximum(m_prev, jnp.max(s, axis=-1, keepdims=True))
    alpha = jnp.exp(m_prev - m_new)
    p = jnp.exp(s - m_new)
    l_sc[...] = alpha * l_sc[...] + jnp.sum(p, axis=-1, keepdims=True)
    acc_sc[...] = alpha * acc_sc[...] + jnp.einsum(
        "bqk,bkd->bqd", p.astype(compute_dtype), v_proj,
        preferred_element_type=jnp.float32)
    m_sc[...] = m_new

    @pl.when(ki == pl.num_programs(2) - 1)
    def _finalize():
        out_ref[...] = (acc_sc[...] *
                        pl.reciprocal(l_sc[...], approx=approx_recip)
                        ).astype(out_ref.dtype)


def single_head_attention(query, key, value, mask,
                          wq, bq, wk, bk, wv, bv,
                          *, inf: float = 1e9, compute_dtype=jnp.bfloat16):
    """query/key/value: (B, S, dim_in); mask: None, "causal", or a (B, S, S)
    bool tensor (True = masked out); weights in PyTorch nn.Linear layout
    (dim_out, dim_in). Returns the attention output (B, S, dim_v) in f32."""
    B, S, dim_in = query.shape
    dim_q = wq.shape[0]
    dim_v = wv.shape[0]

    dq_pad = _round_up(dim_q, 128)
    dv_pad = _round_up(dim_v, 128)
    scale = 1.0 / float(np.sqrt(dim_q))          # folded into Wq / bq

    def prep_w(w, d_pad, s=1.0):
        wt = (w.T * jnp.float32(s)).astype(compute_dtype)   # (dim_in, dim_out)
        return jnp.pad(wt, ((0, 0), (0, d_pad - wt.shape[1])))

    def prep_b(b, d_pad, s=1.0):
        b2 = (b * jnp.float32(s)).reshape(1, -1).astype(jnp.float32)
        return jnp.pad(b2, ((0, 0), (0, d_pad - b2.shape[1])))

    wq_t = prep_w(wq, dq_pad, scale)
    wk_t = prep_w(wk, dq_pad)
    wv_t = prep_w(wv, dv_pad)
    bq2 = prep_b(bq, dq_pad, scale)
    bk2 = prep_b(bk, dq_pad)
    bv2 = prep_b(bv, dv_pad)

    TQ, TK, S_pad = _choose_tiles(S)
    n_q, n_kv = S_pad // TQ, S_pad // TK
    num_tc = _num_tensorcores()
    TB = _choose_tb(B, TK, n_q, num_tc)
    pad_s = S_pad - S

    def pad_seq(x):
        return jnp.pad(x, ((0, 0), (0, pad_s), (0, 0))) if pad_s else x

    q_p, k_p, v_p = pad_seq(query), pad_seq(key), pad_seq(value)

    seq_q_spec = pl.BlockSpec((TB, TQ, dim_in), lambda b, qi, ki: (b, qi, 0))
    seq_k_spec = pl.BlockSpec((TB, TK, dim_in), lambda b, qi, ki: (b, ki, 0))
    full2 = lambda shape: pl.BlockSpec(shape, lambda b, qi, ki: (0, 0))

    args = [q_p, k_p, v_p]
    in_specs = [seq_q_spec, seq_k_spec, seq_k_spec]

    if isinstance(mask, str):
        if mask != "causal":
            raise ValueError("mask must be None, 'causal', or a bool tensor")
        mask_mode = "causal"                      # built in-kernel, no HBM stream
    elif mask is not None:
        mask_mode = "tensor"
        mask_i8 = mask.astype(jnp.int8)           # 4x less DMA than f32
        if pad_s:
            mask_i8 = jnp.pad(mask_i8, ((0, 0), (0, pad_s), (0, pad_s)))
        args.append(mask_i8)
        in_specs.append(pl.BlockSpec((TB, TQ, TK), lambda b, qi, ki: (b, qi, ki)))
    else:
        mask_mode = "none"                        # no mask operand at all

    args += [wq_t, bq2, wk_t, bk2, wv_t, bv2]
    in_specs += [full2((dim_in, dq_pad)), full2((1, dq_pad)),
                 full2((dim_in, dq_pad)), full2((1, dq_pad)),
                 full2((dim_in, dv_pad)), full2((1, dv_pad))]

    approx_recip = jnp.dtype(compute_dtype) != jnp.dtype(jnp.float32)
    kernel = functools.partial(
        _flash_attn_kernel,
        mask_mode=mask_mode, inf=inf, kv_len=S, kv_padded=bool(pad_s),
        compute_dtype=compute_dtype, approx_recip=approx_recip)

    out_padded = pl.pallas_call(
        kernel,
        out_shape=jax.ShapeDtypeStruct((B, S_pad, dv_pad), jnp.float32),
        grid_spec=pltpu.PrefetchScalarGridSpec(
            num_scalar_prefetch=0,
            grid=(B // TB, n_q, n_kv),
            in_specs=in_specs,
            out_specs=pl.BlockSpec((TB, TQ, dv_pad),
                                   lambda b, qi, ki: (b, qi, 0)),
            scratch_shapes=[
                pltpu.VMEM((TB, TQ, dq_pad), compute_dtype),   # Q projection
                pltpu.VMEM((TB, TQ, 1), jnp.float32),          # m (running max)
                pltpu.VMEM((TB, TQ, 1), jnp.float32),          # l (running sum)
                pltpu.VMEM((TB, TQ, dv_pad), jnp.float32),     # acc
            ]),
        compiler_params=pltpu.CompilerParams(
            dimension_semantics=("parallel", "parallel", "arbitrary"),
            vmem_limit_bytes=_vmem_limit_bytes()),
    )(*args)

    out = out_padded
    if pad_s:
        out = out[:, :S, :]
    if dv_pad != dim_v:
        out = out[..., :dim_v]
    return out


def _reference(query, key, value, mask, wq, bq, wk, bk, wv, bv, inf=1e9):
    qp = query @ wq.T + bq
    kp = key @ wk.T + bk
    vp = value @ wv.T + bv
    scale = 1.0 / jnp.sqrt(jnp.float32(qp.shape[-1]))
    aff = jnp.einsum("bqd,bkd->bqk", qp, kp) * scale
    if mask is not None:
        aff = jnp.where(mask, -inf, aff)
    aff = jax.nn.softmax(aff, axis=-1)
    return jnp.einsum("bqk,bkd->bqd", aff, vp)


if __name__ == "__main__":
    # Small shapes consistent with the module: (batch, seq, dim_in)
    B, S, dim_in, dim_q, dim_v = 2, 8, 32, 32, 32

    key0 = jax.random.PRNGKey(0)
    ks = jax.random.split(key0, 10)

    # Deterministic init matching the module's __init__:
    #   weights ~ U(-c, c) with c = sqrt(6 / (dim_in + dim_out))
    #   biases follow nn.Linear default: U(-1/sqrt(fan_in), 1/sqrt(fan_in))
    cq = float(np.sqrt(6.0 / (dim_in + dim_q)))
    cv = float(np.sqrt(6.0 / (dim_in + dim_v)))
    cb = float(1.0 / np.sqrt(dim_in))
    wq = jax.random.uniform(ks[0], (dim_q, dim_in), jnp.float32, -cq, cq)
    wk = jax.random.uniform(ks[1], (dim_q, dim_in), jnp.float32, -cq, cq)
    wv = jax.random.uniform(ks[2], (dim_v, dim_in), jnp.float32, -cv, cv)
    bq = jax.random.uniform(ks[3], (dim_q,), jnp.float32, -cb, cb)
    bk = jax.random.uniform(ks[4], (dim_q,), jnp.float32, -cb, cb)
    bv = jax.random.uniform(ks[5], (dim_v,), jnp.float32, -cb, cb)

    query = jax.random.normal(ks[6], (B, S, dim_in), jnp.float32)
    key_t = jax.random.normal(ks[7], (B, S, dim_in), jnp.float32)
    value = jax.random.normal(ks[8], (B, S, dim_in), jnp.float32)

    causal = jnp.triu(jnp.ones((S, S), dtype=bool), k=1)  # True == masked out
    mask = jnp.broadcast_to(causal, (B, S, S))

    ref_m = _reference(query, key_t, value, mask, wq, bq, wk, bk, wv, bv)
    ref_n = _reference(query, key_t, value, None, wq, bq, wk, bk, wv, bv)

    # 1) Default bf16 MXU path with an explicit bool mask (module semantics).
    out_bf16 = jax.block_until_ready(
        single_head_attention(query, key_t, value, mask, wq, bq, wk, bk, wv, bv))
    np.testing.assert_allclose(np.asarray(out_bf16), np.asarray(ref_m),
                               rtol=1e-1, atol=1e-1)

    # 2) f32 compute path (exact divide) — tight check of the fused algorithm.
    out_f32 = jax.block_until_ready(
        single_head_attention(query, key_t, value, mask, wq, bq, wk, bk, wv, bv,
                              compute_dtype=jnp.float32))
    np.testing.assert_allclose(np.asarray(out_f32), np.asarray(ref_m),
                               rtol=2e-3, atol=2e-3)

    # 3) In-kernel causal mask (no (B,S,S) mask DMA at all).
    out_causal = jax.block_until_ready(
        single_head_attention(query, key_t, value, "causal",
                              wq, bq, wk, bk, wv, bv, compute_dtype=jnp.float32))
    np.testing.assert_allclose(np.asarray(out_causal), np.asarray(ref_m),
                               rtol=2e-3, atol=2e-3)

    # 4) mask=None path (mask operand skipped entirely).
    out_none = jax.block_until_ready(
        single_head_attention(query, key_t, value, None,
                              wq, bq, wk, bk, wv, bv, compute_dtype=jnp.float32))
    np.testing.assert_allclose(np.asarray(out_none), np.asarray(ref_n),
                               rtol=2e-3, atol=2e-3)

    # 5) S not a multiple of 8 exercises seq padding + in-kernel KV masking.
    S2 = 6
    q2, k2, v2 = query[:, :S2], key_t[:, :S2], value[:, :S2]
    m2 = mask[:, :S2, :S2]
    ref2 = _reference(q2, k2, v2, m2, wq, bq, wk, bk, wv, bv)
    out2 = jax.block_until_ready(
        single_head_attention(q2, k2, v2, m2, wq, bq, wk, bk, wv, bv,
                              compute_dtype=jnp.float32))
    np.testing.assert_allclose(np.asarray(out2), np.asarray(ref2),
                               rtol=2e-3, atol=2e-3)

    print("KERNEL_OK")
</pallas_src>

<mosaic_0001>
module attributes {stable_mosaic.version = 11 : i64} {
  func.func @_flash_attn_kernel(%arg0: i32, %arg1: i32, %arg2: i32, %arg3: memref<2x8x32xf32, #tpu.memory_space<vmem>>, %arg4: memref<2x8x32xf32, #tpu.memory_space<vmem>>, %arg5: memref<2x8x32xf32, #tpu.memory_space<vmem>>, %arg6: memref<2x8x8xi8, #tpu.memory_space<vmem>>, %arg7: memref<32x128xbf16, #tpu.memory_space<vmem>>, %arg8: memref<1x128xf32, #tpu.memory_space<vmem>>, %arg9: memref<32x128xbf16, #tpu.memory_space<vmem>>, %arg10: memref<1x128xf32, #tpu.memory_space<vmem>>, %arg11: memref<32x128xbf16, #tpu.memory_space<vmem>>, %arg12: memref<1x128xf32, #tpu.memory_space<vmem>>, %arg13: memref<2x8x128xf32, #tpu.memory_space<vmem>>, %arg14: memref<2x8x128xbf16, #tpu.memory_space<vmem>>, %arg15: memref<2x8x1xf32, #tpu.memory_space<vmem>>, %arg16: memref<2x8x1xf32, #tpu.memory_space<vmem>>, %arg17: memref<2x8x128xf32, #tpu.memory_space<vmem>>) attributes {dimension_semantics = [#tpu.dimension_semantics<parallel>, #tpu.dimension_semantics<parallel>, #tpu.dimension_semantics<arbitrary>], iteration_bounds = array<i64: 1, 1, 1>, scalar_prefetch = 0 : i64, scratch_operands = 4 : i64, tpu.core_type = #tpu.core_type<tc>, window_params = [{transform_indices = @transform_0, window_bounds = array<i64: 2, 8, 32>}, {transform_indices = @transform_1, window_bounds = array<i64: 2, 8, 32>}, {transform_indices = @transform_2, window_bounds = array<i64: 2, 8, 32>}, {transform_indices = @transform_3, window_bounds = array<i64: 2, 8, 8>}, {pipeline_mode = #tpu.pipeline_mode<synchronous>, transform_indices = @transform_4, window_bounds = array<i64: 32, 128>}, {pipeline_mode = #tpu.pipeline_mode<synchronous>, transform_indices = @transform_5, window_bounds = array<i64: 1, 128>}, {pipeline_mode = #tpu.pipeline_mode<synchronous>, transform_indices = @transform_6, window_bounds = array<i64: 32, 128>}, {pipeline_mode = #tpu.pipeline_mode<synchronous>, transform_indices = @transform_7, window_bounds = array<i64: 1, 128>}, {pipeline_mode = #tpu.pipeline_mode<synchronous>, transform_indices = @transform_8, window_bounds = array<i64: 32, 128>}, {pipeline_mode = #tpu.pipeline_mode<synchronous>, transform_indices = @transform_9, window_bounds = array<i64: 1, 128>}, {transform_indices = @transform_10, window_bounds = array<i64: 2, 8, 128>}]} {
    %c0_i32 = arith.constant 0 : i32
    %0 = arith.cmpi eq, %arg2, %c0_i32 : i32
    %1 = arith.extui %0 : i1 to i32
    %c0_i32_0 = arith.constant 0 : i32
    %2 = arith.cmpi ne, %1, %c0_i32_0 : i32
    scf.if %2 {
      %c0_46 = arith.constant 0 : index
      %c0_47 = arith.constant 0 : index
      %c0_48 = arith.constant 0 : index
      %56 = vector.load %arg3[%c0_46, %c0_47, %c0_48] : memref<2x8x32xf32, #tpu.memory_space<vmem>>, vector<2x8x32xf32>
      %57 = vector.shape_cast %56 : vector<2x8x32xf32> to vector<16x32xf32>
      %58 = arith.truncf %57 : vector<16x32xf32> to vector<16x32xbf16>
      %c0_49 = arith.constant 0 : index
      %c0_50 = arith.constant 0 : index
      %59 = vector.load %arg7[%c0_49, %c0_50] : memref<32x128xbf16, #tpu.memory_space<vmem>>, vector<32x128xbf16>
      %cst_51 = arith.constant dense<0.000000e+00> : vector<16x128xf32>
      %60 = tpu.matmul %58, %59, %cst_51 {dimension_numbers = #tpu.dot_dimension_numbers<[1], [0], [0], [1], [0, 0, 1, 1], [], []>} : vector<16x32xbf16>, vector<32x128xbf16>, vector<16x128xf32> -> vector<16x128xf32>
      %c0_52 = arith.constant 0 : index
      %c0_53 = arith.constant 0 : index
      %61 = vector.load %arg8[%c0_52, %c0_53] : memref<1x128xf32, #tpu.memory_space<vmem>>, vector<1x128xf32>
      %62 = vector.broadcast %61 : vector<1x128xf32> to vector<16x128xf32>
      %63 = arith.addf %60, %62 : vector<16x128xf32>
      %64 = vector.shape_cast %63 : vector<16x128xf32> to vector<2x8x128xf32>
      %65 = arith.truncf %64 : vector<2x8x128xf32> to vector<2x8x128xbf16>
      %c0_54 = arith.constant 0 : index
      %c0_55 = arith.constant 0 : index
      %c0_56 = arith.constant 0 : index
      %66 = vector.load %arg14[%c0_54, %c0_55, %c0_56] : memref<2x8x128xbf16, #tpu.memory_space<vmem>>, vector<2x8x128xbf16>
      tpu.vector_store %arg14[%c0_54, %c0_55, %c0_56], %65 {strides = array<i32>} : memref<2x8x128xbf16, #tpu.memory_space<vmem>>, vector<2x8x128xbf16>,
      %cst_57 = arith.constant 0xFF800000 : f32
      %67 = vector.broadcast %cst_57 : f32 to vector<2x8x1xf32>
      %c0_58 = arith.constant 0 : index
      %c0_59 = arith.constant 0 : index
      %c0_60 = arith.constant 0 : index
      %68 = vector.load %arg15[%c0_58, %c0_59, %c0_60] : memref<2x8x1xf32, #tpu.memory_space<vmem>>, vector<2x8x1xf32>
      tpu.vector_store %arg15[%c0_58, %c0_59, %c0_60], %67 {strides = array<i32>} : memref<2x8x1xf32, #tpu.memory_space<vmem>>, vector<2x8x1xf32>,
      %cst_61 = arith.constant 0.000000e+00 : f32
      %69 = vector.broadcast %cst_61 : f32 to vector<2x8x1xf32>
      %c0_62 = arith.constant 0 : index
      %c0_63 = arith.constant 0 : index
      %c0_64 = arith.constant 0 : index
      %70 = vector.load %arg16[%c0_62, %c0_63, %c0_64] : memref<2x8x1xf32, #tpu.memory_space<vmem>>, vector<2x8x1xf32>
      tpu.vector_store %arg16[%c0_62, %c0_63, %c0_64], %69 {strides = array<i32>} : memref<2x8x1xf32, #tpu.memory_space<vmem>>, vector<2x8x1xf32>,
      %cst_65 = arith.constant 0.000000e+00 : f32
      %71 = vector.broadcast %cst_65 : f32 to vector<2x8x128xf32>
      %c0_66 = arith.constant 0 : index
      %c0_67 = arith.constant 0 : index
      %c0_68 = arith.constant 0 : index
      %72 = vector.load %arg17[%c0_66, %c0_67, %c0_68] : memref<2x8x128xf32, #tpu.memory_space<vmem>>, vector<2x8x128xf32>
      tpu.vector_store %arg17[%c0_66, %c0_67, %c0_68], %71 {strides = array<i32>} : memref<2x8x128xf32, #tpu.memory_space<vmem>>, vector<2x8x128xf32>,
    } else {
    }
    %c0 = arith.constant 0 : index
    %c0_1 = arith.constant 0 : index
    %c0_2 = arith.constant 0 : index
    %3 = vector.load %arg4[%c0, %c0_1, %c0_2] : memref<2x8x32xf32, #tpu.memory_space<vmem>>, vector<2x8x32xf32>
    %4 = vector.shape_cast %3 : vector<2x8x32xf32> to vector<16x32xf32>
    %5 = arith.truncf %4 : vector<16x32xf32> to vector<16x32xbf16>
    %c0_3 = arith.constant 0 : index
    %c0_4 = arith.constant 0 : index
    %6 = vector.load %arg9[%c0_3, %c0_4] : memref<32x128xbf16, #tpu.memory_space<vmem>>, vector<32x128xbf16>
    %cst = arith.constant dense<0.000000e+00> : vector<16x128xf32>
    %7 = tpu.matmul %5, %6, %cst {dimension_numbers = #tpu.dot_dimension_numbers<[1], [0], [0], [1], [0, 0, 1, 1], [], []>} : vector<16x32xbf16>, vector<32x128xbf16>, vector<16x128xf32> -> vector<16x128xf32>
    %c0_5 = arith.constant 0 : index
    %c0_6 = arith.constant 0 : index
    %8 = vector.load %arg10[%c0_5, %c0_6] : memref<1x128xf32, #tpu.memory_space<vmem>>, vector<1x128xf32>
    %9 = vector.broadcast %8 : vector<1x128xf32> to vector<16x128xf32>
    %10 = arith.addf %7, %9 : vector<16x128xf32>
    %11 = vector.shape_cast %10 : vector<16x128xf32> to vector<2x8x128xf32>
    %12 = arith.truncf %11 : vector<2x8x128xf32> to vector<2x8x128xbf16>
    %c0_7 = arith.constant 0 : index
    %c0_8 = arith.constant 0 : index
    %c0_9 = arith.constant 0 : index
    %13 = vector.load %arg5[%c0_7, %c0_8, %c0_9] : memref<2x8x32xf32, #tpu.memory_space<vmem>>, vector<2x8x32xf32>
    %14 = vector.shape_cast %13 : vector<2x8x32xf32> to vector<16x32xf32>
    %15 = arith.truncf %14 : vector<16x32xf32> to vector<16x32xbf16>
    %c0_10 = arith.constant 0 : index
    %c0_11 = arith.constant 0 : index
    %16 = vector.load %arg11[%c0_10, %c0_11] : memref<32x128xbf16, #tpu.memory_space<vmem>>, vector<32x128xbf16>
    %cst_12 = arith.constant dense<0.000000e+00> : vector<16x128xf32>
    %17 = tpu.matmul %15, %16, %cst_12 {dimension_numbers = #tpu.dot_dimension_numbers<[1], [0], [0], [1], [0, 0, 1, 1], [], []>} : vector<16x32xbf16>, vector<32x128xbf16>, vector<16x128xf32> -> vector<16x128xf32>
    %c0_13 = arith.constant 0 : index
    %c0_14 = arith.constant 0 : index
    %18 = vector.load %arg12[%c0_13, %c0_14] : memref<1x128xf32, #tpu.memory_space<vmem>>, vector<1x128xf32>
    %19 = vector.broadcast %18 : vector<1x128xf32> to vector<16x128xf32>
    %20 = arith.addf %17, %19 : vector<16x128xf32>
    %21 = vector.shape_cast %20 : vector<16x128xf32> to vector<2x8x128xf32>
    %22 = arith.truncf %21 : vector<2x8x128xf32> to vector<2x8x128xbf16>
    %c0_15 = arith.constant 0 : index
    %c0_16 = arith.constant 0 : index
    %c0_17 = arith.constant 0 : index
    %23 = vector.load %arg14[%c0_15, %c0_16, %c0_17] : memref<2x8x128xbf16, #tpu.memory_space<vmem>>, vector<2x8x128xbf16>
    "tpu.trace_start"() <{level = 10 : i32, message = "bqd,bkd->bqk"}> : () -> ()
    %cst_18 = arith.constant dense<0.000000e+00> : vector<2x8x8xf32>
    %24 = tpu.matmul %23, %12, %cst_18 {dimension_numbers = #tpu.dot_dimension_numbers<[2], [2], [1], [1], [0, 0, 0, 1, 1, 1], [0], [0]>} : vector<2x8x128xbf16>, vector<2x8x128xbf16>, vector<2x8x8xf32> -> vector<2x8x8xf32>
    "tpu.trace_stop"() : () -> ()
    %c0_19 = arith.constant 0 : index
    %c0_20 = arith.constant 0 : index
    %c0_21 = arith.constant 0 : index
    %25 = vector.load %arg6[%c0_19, %c0_20, %c0_21] : memref<2x8x8xi8, #tpu.memory_space<vmem>>, vector<2x8x8xi8>
    %c0_i8 = arith.constant 0 : i8
    %26 = vector.broadcast %c0_i8 : i8 to vector<2x8x8xi8>
    %27 = arith.cmpi ne, %25, %26 : vector<2x8x8xi8>
    %cst_22 = arith.constant -1.000000e+09 : f32
    %28 = vector.broadcast %cst_22 : f32 to vector<2x8x8xf32>
    %29 = arith.select %27, %28, %24 : vector<2x8x8xi1>, vector<2x8x8xf32>
    %c0_23 = arith.constant 0 : index
    %c0_24 = arith.constant 0 : index
    %c0_25 = arith.constant 0 : index
    %30 = vector.load %arg15[%c0_23, %c0_24, %c0_25] : memref<2x8x1xf32, #tpu.memory_space<vmem>>, vector<2x8x1xf32>
    %cst_26 = arith.constant dense<0xFF800000> : vector<2x8xf32>
    %31 = vector.multi_reduction <maximumf>, %29, %cst_26 [2] : vector<2x8x8xf32> to vector<2x8xf32>
    %32 = vector.shape_cast %31 : vector<2x8xf32> to vector<2x8x1xf32>
    %33 = arith.maximumf %30, %32 : vector<2x8x1xf32>
    %34 = arith.subf %30, %33 : vector<2x8x1xf32>
    %35 = math.exp %34 : vector<2x8x1xf32>
    %36 = vector.broadcast %33 : vector<2x8x1xf32> to vector<2x8x8xf32>
    %37 = arith.subf %29, %36 : vector<2x8x8xf32>
    %38 = math.exp %37 : vector<2x8x8xf32>
    %c0_27 = arith.constant 0 : index
    %c0_28 = arith.constant 0 : index
    %c0_29 = arith.constant 0 : index
    %39 = vector.load %arg16[%c0_27, %c0_28, %c0_29] : memref<2x8x1xf32, #tpu.memory_space<vmem>>, vector<2x8x1xf32>
    %40 = arith.mulf %35, %39 : vector<2x8x1xf32>
    %cst_30 = arith.constant dense<0.000000e+00> : vector<2x8xf32>
    %41 = vector.multi_reduction <add>, %38, %cst_30 [2] : vector<2x8x8xf32> to vector<2x8xf32>
    %42 = vector.shape_cast %41 : vector<2x8xf32> to vector<2x8x1xf32>
    %43 = arith.addf %40, %42 : vector<2x8x1xf32>
    %c0_31 = arith.constant 0 : index
    %c0_32 = arith.constant 0 : index
    %c0_33 = arith.constant 0 : index
    %44 = vector.load %arg16[%c0_31, %c0_32, %c0_33] : memref<2x8x1xf32, #tpu.memory_space<vmem>>, vector<2x8x1xf32>
    tpu.vector_store %arg16[%c0_31, %c0_32, %c0_33], %43 {strides = array<i32>} : memref<2x8x1xf32, #tpu.memory_space<vmem>>, vector<2x8x1xf32>,
    %c0_34 = arith.constant 0 : index
    %c0_35 = arith.constant 0 : index
    %c0_36 = arith.constant 0 : index
    %45 = vector.load %arg17[%c0_34, %c0_35, %c0_36] : memref<2x8x128xf32, #tpu.memory_space<vmem>>, vector<2x8x128xf32>
    %46 = vector.broadcast %35 : vector<2x8x1xf32> to vector<2x8x128xf32>
    %47 = arith.mulf %46, %45 : vector<2x8x128xf32>
    %48 = arith.truncf %38 : vector<2x8x8xf32> to vector<2x8x8xbf16>
    "tpu.trace_start"() <{level = 10 : i32, message = "bqk,bkd->bqd"}> : () -> ()
    %cst_37 = arith.constant dense<0.000000e+00> : vector<2x8x128xf32>
    %49 = tpu.matmul %48, %22, %cst_37 {dimension_numbers = #tpu.dot_dimension_numbers<[2], [1], [1], [2], [0, 0, 0, 1, 1, 2], [0], [0]>} : vector<2x8x8xbf16>, vector<2x8x128xbf16>, vector<2x8x128xf32> -> vector<2x8x128xf32>
    "tpu.trace_stop"() : () -> ()
    %50 = arith.addf %47, %49 : vector<2x8x128xf32>
    %c0_38 = arith.constant 0 : index
    %c0_39 = arith.constant 0 : index
    %c0_40 = arith.constant 0 : index
    %51 = vector.load %arg17[%c0_38, %c0_39, %c0_40] : memref<2x8x128xf32, #tpu.memory_space<vmem>>, vector<2x8x128xf32>
    tpu.vector_store %arg17[%c0_38, %c0_39, %c0_40], %50 {strides = array<i32>} : memref<2x8x128xf32, #tpu.memory_space<vmem>>, vector<2x8x128xf32>,
    %c0_41 = arith.constant 0 : index
    %c0_42 = arith.constant 0 : index
    %c0_43 = arith.constant 0 : index
    %52 = vector.load %arg15[%c0_41, %c0_42, %c0_43] : memref<2x8x1xf32, #tpu.memory_space<vmem>>, vector<2x8x1xf32>
    tpu.vector_store %arg15[%c0_41, %c0_42, %c0_43], %33 {strides = array<i32>} : memref<2x8x1xf32, #tpu.memory_space<vmem>>, vector<2x8x1xf32>,
    %c0_i32_44 = arith.constant 0 : i32
    %53 = arith.cmpi eq, %arg2, %c0_i32_44 : i32
    %54 = arith.extui %53 : i1 to i32
    %c0_i32_45 = arith.constant 0 : i32
    %55 = arith.cmpi ne, %54, %c0_i32_45 : i32
    scf.if %55 {
      %c0_46 = arith.constant 0 : index
      %c0_47 = arith.constant 0 : index
      %c0_48 = arith.constant 0 : index
      %56 = vector.load %arg17[%c0_46, %c0_47, %c0_48] : memref<2x8x128xf32, #tpu.memory_space<vmem>>, vector<2x8x128xf32>
      %c0_49 = arith.constant 0 : index
      %c0_50 = arith.constant 0 : index
      %c0_51 = arith.constant 0 : index
      %57 = vector.load %arg16[%c0_49, %c0_50, %c0_51] : memref<2x8x1xf32, #tpu.memory_space<vmem>>, vector<2x8x1xf32>
      %58 = tpu.reciprocal %57 {approx = true} : vector<2x8x1xf32> -> vector<2x8x1xf32>
      %59 = vector.broadcast %58 : vector<2x8x1xf32> to vector<2x8x128xf32>
      %60 = arith.mulf %56, %59 : vector<2x8x128xf32>
      %c0_52 = arith.constant 0 : index
      %c0_53 = arith.constant 0 : index
      %c0_54 = arith.constant 0 : index
      %61 = vector.load %arg13[%c0_52, %c0_53, %c0_54] : memref<2x8x128xf32, #tpu.memory_space<vmem>>, vector<2x8x128xf32>
      tpu.vector_store %arg13[%c0_52, %c0_53, %c0_54], %60 {strides = array<i32>} : memref<2x8x128xf32, #tpu.memory_space<vmem>>, vector<2x8x128xf32>,
    } else {
    }
    return
  }
  func.func @transform_0(%arg0: i32, %arg1: i32, %arg2: i32) -> (i32, i32, i32) {
    %c0_i32 = arith.constant 0 : i32
    %c0_i32_0 = arith.constant 0 : i32
    return %arg0, %arg1, %c0_i32 : i32, i32, i32
  }
  func.func @transform_1(%arg0: i32, %arg1: i32, %arg2: i32) -> (i32, i32, i32) {
    %c0_i32 = arith.constant 0 : i32
    %c0_i32_0 = arith.constant 0 : i32
    return %arg0, %arg2, %c0_i32 : i32, i32, i32
  }
  func.func @transform_2(%arg0: i32, %arg1: i32, %arg2: i32) -> (i32, i32, i32) {
    %c0_i32 = arith.constant 0 : i32
    %c0_i32_0 = arith.constant 0 : i32
    return %arg0, %arg2, %c0_i32 : i32, i32, i32
  }
  func.func @transform_3(%arg0: i32, %arg1: i32, %arg2: i32) -> (i32, i32, i32) {
    %c0_i32 = arith.constant 0 : i32
    return %arg0, %arg1, %arg2 : i32, i32, i32
  }
  func.func @transform_4(%arg0: i32, %arg1: i32, %arg2: i32) -> (i32, i32) {
    %c0_i32 = arith.constant 0 : i32
    %c0_i32_0 = arith.constant 0 : i32
    %c0_i32_1 = arith.constant 0 : i32
    return %c0_i32, %c0_i32_0 : i32, i32
  }
  func.func @transform_5(%arg0: i32, %arg1: i32, %arg2: i32) -> (i32, i32) {
    %c0_i32 = arith.constant 0 : i32
    %c0_i32_0 = arith.constant 0 : i32
    %c0_i32_1 = arith.constant 0 : i32
    return %c0_i32, %c0_i32_0 : i32, i32
  }
  func.func @transform_6(%arg0: i32, %arg1: i32, %arg2: i32) -> (i32, i32) {
    %c0_i32 = arith.constant 0 : i32
    %c0_i32_0 = arith.constant 0 : i32
    %c0_i32_1 = arith.constant 0 : i32
    return %c0_i32, %c0_i32_0 : i32, i32
  }
  func.func @transform_7(%arg0: i32, %arg1: i32, %arg2: i32) -> (i32, i32) {
    %c0_i32 = arith.constant 0 : i32
    %c0_i32_0 = arith.constant 0 : i32
    %c0_i32_1 = arith.constant 0 : i32
    return %c0_i32, %c0_i32_0 : i32, i32
  }
  func.func @transform_8(%arg0: i32, %arg1: i32, %arg2: i32) -> (i32, i32) {
    %c0_i32 = arith.constant 0 : i32
    %c0_i32_0 = arith.constant 0 : i32
    %c0_i32_1 = arith.constant 0 : i32
    return %c0_i32, %c0_i32_0 : i32, i32
  }
  func.func @transform_9(%arg0: i32, %arg1: i32, %arg2: i32) -> (i32, i32) {
    %c0_i32 = arith.constant 0 : i32
    %c0_i32_0 = arith.constant 0 : i32
    %c0_i32_1 = arith.constant 0 : i32
    return %c0_i32, %c0_i32_0 : i32, i32
  }
  func.func @transform_10(%arg0: i32, %arg1: i32, %arg2: i32) -> (i32, i32, i32) {
    %c0_i32 = arith.constant 0 : i32
    %c0_i32_0 = arith.constant 0 : i32
    return %arg0, %arg1, %c0_i32 : i32, i32, i32
  }
}

</mosaic_0001>

<llo_original>
// kernel: tpu_custom_call.1
$region0: #{tpu_custom_call.1}
  #allocation0 [shape = 'u32[]', space=smem, size = 0x4, offset = 0x4, fixed_abs, tag = 'smem constant byte address 0x4 - core index']
  #allocation1 [shape = 'u32[72,128]{1,0:T(1,128)}', space=vmem, size = 0x9000, scoped, tag = 'internal scratch']
  #allocation2 [shape = 'bf16[2,8,128]{2,1,0:T(8,128)(2,1)}', space=vmem, size = 0x1000, scoped, tag = 'scratch operand']
  #allocation3 [shape = 'f32[2,8,1]{2,1,0:T(8,128)}', space=vmem, size = 0x2000, scoped, tag = 'scratch operand']
  #allocation4 [shape = 'f32[2,8,1]{2,1,0:T(8,128)}', space=vmem, size = 0x2000, scoped, tag = 'scratch operand']
  #allocation5 [shape = 'f32[2,8,128]{2,1,0:T(8,128)}', space=vmem, size = 0x2000, scoped, tag = 'scratch operand']
  %s0 = inlined_call_operand.hbm [shape: f32[2,8,32], index: 0, kind: input, shape index: {}]
  %s1 = inlined_call_operand.hbm [shape: f32[2,8,32], index: 1, kind: input, shape index: {}]
  %s2 = inlined_call_operand.hbm [shape: f32[2,8,32], index: 2, kind: input, shape index: {}]
  %s3 = inlined_call_operand.hbm [shape: s8[2,8,8], index: 3, kind: input, shape index: {}]
  %s4 = inlined_call_operand.hbm [shape: bf16[32,128], index: 4, kind: input, shape index: {}]
  %s5 = inlined_call_operand.vmem [shape: f32[1,128], index: 5, kind: input, shape index: {}]
  %s6 = inlined_call_operand.hbm [shape: bf16[32,128], index: 6, kind: input, shape index: {}]
  %s7 = inlined_call_operand.vmem [shape: f32[1,128], index: 7, kind: input, shape index: {}]
  %s8 = inlined_call_operand.hbm [shape: bf16[32,128], index: 8, kind: input, shape index: {}]
  %s9 = inlined_call_operand.vmem [shape: f32[1,128], index: 9, kind: input, shape index: {}]
  %s10 = inlined_call_operand.hbm [shape: f32[2,8,128], index: 10, kind: output, shape index: {}]
  %s11 = sld [smem:[#allocation0]]
  $region86: #{tpu_custom_call.1} parent=0
    _
  %s13 = ssub.s32 1, %s11
  %s14 = scalar_select 0, %s13, %s11
  $region1: #{tpu_custom_call.1} parent=0
    #allocation6 [shape = 'u8[8192]{0}', space=vmem, size = 0x2000, scoped, tag = 'input window, operand 0, single buffered']
    #allocation7 [shape = 's32[1]{0}', space=sflag, size = 0x4, scoped, tag = 'scoped memory for tpu_custom_call.1']
    #allocation8 [shape = 's32[1]{0}', space=sflag, size = 0x4, scoped, tag = 'scoped memory for tpu_custom_call.1']
    #allocation9 [shape = 'u8[8192]{0}', space=vmem, size = 0x2000, scoped, tag = 'input window, operand 1, single buffered']
    #allocation10 [shape = 's32[1]{0}', space=sflag, size = 0x4, scoped, tag = 'scoped memory for tpu_custom_call.1']
    #allocation11 [shape = 'u8[8192]{0}', space=vmem, size = 0x2000, scoped, tag = 'input window, operand 2, single buffered']
    #allocation12 [shape = 'u8[2048]{0}', space=vmem, size = 0x800, scoped, tag = 'input window, operand 3, single buffered']
    #allocation13 [shape = 's32[1]{0}', space=sflag, size = 0x4, scoped, tag = 'scoped memory for tpu_custom_call.1']
    #allocation14 [shape = 'u8[8192]{0}', space=vmem, size = 0x2000, scoped, tag = 'input window, operand 4, single buffered']
    #allocation15 [shape = 'u8[8192]{0}', space=vmem, size = 0x2000, scoped, tag = 'input window, operand 6, single buffered']
    #allocation16 [shape = 's32[1]{0}', space=sflag, size = 0x4, scoped, tag = 'scoped memory for tpu_custom_call.1']
    #allocation17 [shape = 'u8[8192]{0}', space=vmem, size = 0x2000, scoped, tag = 'input window, operand 8, single buffered']
    #allocation18 [shape = 'u8[8192]{0}', space=vmem, size = 0x2000, scoped, tag = 'output window, operand 0, single buffered']
    %15 = vsyncpa [#allocation7], 0
    %16 = vsyncpa [#allocation10], 0
    %17 = vsyncpa [#allocation13], 0
    %18 = vsyncpa [#allocation16], 0
    %19 = vsyncpa [#allocation8], 0
    // Predicated region
    $region2: #{tpu_custom_call.1} parent=1 // pred_check
      _
    $region3: #{tpu_custom_call.1} parent=1 // pred_check_branch
      %21 = sbr.rel (0) target = $region5
    $region4: #{tpu_custom_call.1} parent=1 // pred_region
      %23 = vsyncadd [#allocation7], 0
      %s24 = sshll.u32 %s0, 4
      %s25 = int_to_ptr.hbm [resolvable:$true] %s24
      %s26 = sshll.u32 [#allocation6], 4
      %s27 = int_to_ptr.vmem [resolvable:$true] %s26
      %32 = dma.hbm_to_vmem [thread:$0]  %s25, 256, %s27, [#allocation7], 128, 128, 8
    $region5: #{tpu_custom_call.1} parent=1 // pred_fallthru
      _
    // Predicated region
    $region6: #{tpu_custom_call.1} parent=1 // pred_check
      _
    $region7: #{tpu_custom_call.1} parent=1 // pred_check_branch
      %34 = sbr.rel (0) target = $region9
    $region8: #{tpu_custom_call.1} parent=1 // pred_region
      %36 = vsyncadd [#allocation10], 0
      %s37 = sshll.u32 %s1, 4
      %s38 = int_to_ptr.hbm [resolvable:$true] %s37
      %s39 = sshll.u32 [#allocation9], 4
      %s40 = int_to_ptr.vmem [resolvable:$true] %s39
      %45 = dma.hbm_to_vmem [thread:$0]  %s38, 256, %s40, [#allocation10], 128, 128, 8
    $region9: #{tpu_custom_call.1} parent=1 // pred_fallthru
      _
    // Predicated region
    $region10: #{tpu_custom_call.1} parent=1 // pred_check
      _
    $region11: #{tpu_custom_call.1} parent=1 // pred_check_branch
      %47 = sbr.rel (0) target = $region13
    $region12: #{tpu_custom_call.1} parent=1 // pred_region
      %49 = vsyncadd [#allocation10], 0
      %s50 = sshll.u32 %s2, 4
      %s51 = int_to_ptr.hbm [resolvable:$true] %s50
      %s52 = sshll.u32 [#allocation11], 4
      %s53 = int_to_ptr.vmem [resolvable:$true] %s52
      %58 = dma.hbm_to_vmem [thread:$0]  %s51, 256, %s53, [#allocation10], 128, 128, 8
    $region13: #{tpu_custom_call.1} parent=1 // pred_fallthru
      _
    // Predicated region
    $region14: #{tpu_custom_call.1} parent=1 // pred_check
      _
    $region15: #{tpu_custom_call.1} parent=1 // pred_check_branch
      %60 = sbr.rel (0) target = $region17
    $region16: #{tpu_custom_call.1} parent=1 // pred_region
      %62 = vsyncadd [#allocation13], 0
      %s63 = sshll.u32 %s3, 4
      %s64 = int_to_ptr.hbm [resolvable:$true] %s63
      %s65 = sshll.u32 [#allocation12], 4
      %s66 = int_to_ptr.vmem [resolvable:$true] %s65
      %71 = dma.hbm_to_vmem [thread:$0]  %s64, 64, %s66, [#allocation13], 32, 32, 2
    $region17: #{tpu_custom_call.1} parent=1 // pred_fallthru
      _
    // Predicated region
    $region18: #{tpu_custom_call.1} parent=1 // pred_check
      _
    $region19: #{tpu_custom_call.1} parent=1 // pred_check_branch
      %73 = sbr.rel (0) target = $region21
    $region20: #{tpu_custom_call.1} parent=1 // pred_region
      %75 = vsyncadd [#allocation13], 0
      %s76 = sshll.u32 %s4, 4
      %s77 = int_to_ptr.hbm [resolvable:$true] %s76
      %s78 = sshll.u32 [#allocation14], 4
      %s79 = int_to_ptr.vmem [resolvable:$true] %s78
      %84 = dma.hbm_to_vmem [thread:$0]  %s77, 256, %s79, [#allocation13], 64, 64, 4
    $region21: #{tpu_custom_call.1} parent=1 // pred_fallthru
      _
    // Predicated region
    $region22: #{tpu_custom_call.1} parent=1 // pred_check
      _
    $region23: #{tpu_custom_call.1} parent=1 // pred_check_branch
      %86 = sbr.rel (0) target = $region25
    $region24: #{tpu_custom_call.1} parent=1 // pred_region
      _
    $region25: #{tpu_custom_call.1} parent=1 // pred_fallthru
      _
    // Predicated region
    $region26: #{tpu_custom_call.1} parent=1 // pred_check
      _
    $region27: #{tpu_custom_call.1} parent=1 // pred_check_branch
      %88 = sbr.rel (0) target = $region29
    $region28: #{tpu_custom_call.1} parent=1 // pred_region
      %90 = vsyncadd [#allocation16], 0
      %s91 = sshll.u32 %s6, 4
      %s92 = int_to_ptr.hbm [resolvable:$true] %s91
      %s93 = sshll.u32 [#allocation15], 4
      %s94 = int_to_ptr.vmem [resolvable:$true] %s93
      %99 = dma.hbm_to_vmem [thread:$0]  %s92, 256, %s94, [#allocation16], 64, 64, 4
    $region29: #{tpu_custom_call.1} parent=1 // pred_fallthru
      _
    // Predicated region
    $region30: #{tpu_custom_call.1} parent=1 // pred_check
      _
    $region31: #{tpu_custom_call.1} parent=1 // pred_check_branch
      %101 = sbr.rel (0) target = $region33
    $region32: #{tpu_custom_call.1} parent=1 // pred_region
      _
    $region33: #{tpu_custom_call.1} parent=1 // pred_fallthru
      _
    // Predicated region
    $region34: #{tpu_custom_call.1} parent=1 // pred_check
      _
    $region35: #{tpu_custom_call.1} parent=1 // pred_check_branch
      %103 = sbr.rel (0) target = $region37
    $region36: #{tpu_custom_call.1} parent=1 // pred_region
      %105 = vsyncadd [#allocation16], 0
      %s106 = sshll.u32 %s8, 4
      %s107 = int_to_ptr.hbm [resolvable:$true] %s106
      %s108 = sshll.u32 [#allocation17], 4
      %s109 = int_to_ptr.vmem [resolvable:$true] %s108
      %114 = dma.hbm_to_vmem [thread:$0]  %s107, 256, %s109, [#allocation16], 64, 64, 4
    $region37: #{tpu_custom_call.1} parent=1 // pred_fallthru
      _
    // Predicated region
    $region38: #{tpu_custom_call.1} parent=1 // pred_check
      _
    $region39: #{tpu_custom_call.1} parent=1 // pred_check_branch
      %116 = sbr.rel (0) target = $region41
    $region40: #{tpu_custom_call.1} parent=1 // pred_region
      _
    $region41: #{tpu_custom_call.1} parent=1 // pred_fallthru
      _
    // Predicated region
    $region42: #{tpu_custom_call.1} parent=1 // pred_check
      _
    $region43: #{tpu_custom_call.1} parent=1 // pred_check_branch
      %118 = sbr.rel (0) target = $region45
    $region44: #{tpu_custom_call.1} parent=1 // pred_region
      %120 = dma.done [#allocation7], 256
    $region45: #{tpu_custom_call.1} parent=1 // pred_fallthru
      _
    // Predicated region
    $region46: #{tpu_custom_call.1} parent=1 // pred_check
      _
    $region47: #{tpu_custom_call.1} parent=1 // pred_check_branch
      %122 = sbr.rel (0) target = $region49
    $region48: #{tpu_custom_call.1} parent=1 // pred_region
      %124 = dma.done [#allocation10], 256
    $region49: #{tpu_custom_call.1} parent=1 // pred_fallthru
      _
    // Predicated region
    $region50: #{tpu_custom_call.1} parent=1 // pred_check
      _
    $region51: #{tpu_custom_call.1} parent=1 // pred_check_branch
      %126 = sbr.rel (0) target = $region53
    $region52: #{tpu_custom_call.1} parent=1 // pred_region
      %128 = dma.done [#allocation10], 256
    $region53: #{tpu_custom_call.1} parent=1 // pred_fallthru
      _
    // Predicated region
    $region54: #{tpu_custom_call.1} parent=1 // pred_check
      _
    $region55: #{tpu_custom_call.1} parent=1 // pred_check_branch
      %130 = sbr.rel (0) target = $region57
    $region56: #{tpu_custom_call.1} parent=1 // pred_region
      %132 = dma.done [#allocation13], 64
    $region57: #{tpu_custom_call.1} parent=1 // pred_fallthru
      _
    // Predicated region
    $region58: #{tpu_custom_call.1} parent=1 // pred_check
      _
    $region59: #{tpu_custom_call.1} parent=1 // pred_check_branch
      %134 = sbr.rel (0) target = $region61
    $region60: #{tpu_custom_call.1} parent=1 // pred_region
      %136 = dma.done [#allocation13], 256
    $region61: #{tpu_custom_call.1} parent=1 // pred_fallthru
      _
    // Predicated region
    $region62: #{tpu_custom_call.1} parent=1 // pred_check
      _
    $region63: #{tpu_custom_call.1} parent=1 // pred_check_branch
      %138 = sbr.rel (0) target = $region65
    $region64: #{tpu_custom_call.1} parent=1 // pred_region
      %140 = dma.done [#allocation16], 256
    $region65: #{tpu_custom_call.1} parent=1 // pred_fallthru
      _
    // Predicated region
    $region66: #{tpu_custom_call.1} parent=1 // pred_check
      _
    $region67: #{tpu_custom_call.1} parent=1 // pred_check_branch
      %142 = sbr.rel (0) target = $region69
    $region68: #{tpu_custom_call.1} parent=1 // pred_region
      %144 = dma.done [#allocation16], 256
    $region69: #{tpu_custom_call.1} parent=1 // pred_fallthru
      _
    %p148 = scmp.eq.s32.totalorder 0, 0
    // Predicated region
    $region70: #{tpu_custom_call.1} parent=1 // pred_check
      %p149 = pneg %p148
    $region71: #{tpu_custom_call.1} parent=1 // pred_check_branch
      %151 = sbr.rel (%p149) target = $region73
    $region72: #{tpu_custom_call.1} parent=1 // pred_region
      %v152 = vld [vmem:[#allocation6] sm:$0xff]
      %v153 = vld [vmem:[#allocation6 + $0x8] sm:$0xff]
      %v154 = vpack.c.bf16 %v153, %v152
      %v155 = vld [vmem:[#allocation14] sm:$0xf]
      %v156 = vld [vmem:[#allocation14 + $0x4] sm:$0xf]
      %v157 = vld [vmem:[#allocation14 + $0x8] sm:$0xf]
      %v158 = vld [vmem:[#allocation14 + $0xc] sm:$0xf]
      %v159 = vld [vmem:[%s5] sm:$0x1]
      %v161 = vperm.slane %v159, 0
      %v167 = vunpack.c.l.b16 %v155
      %v168 = vunpack.c.l.b16 %v156
      %v169 = vunpack.c.l.b16 %v157
      %v170 = vunpack.c.l.b16 %v158
      %v171 = vpack.c.b16 %v168, %v167
      %v172 = vpack.c.b16 %v170, %v169
      %vm175 = vcmask 261120
      %v177 = vsel %vm175, %v154, 0
      %179 = vmatpush.bf16.msra.mxu0 0
      %180 = vmatpush.bf16.msra.mxu0 0
      %181 = vmatpush.bf16.msra.mxu0 0
      %182 = vmatpush.bf16.msra.mxu0 0
      %183 = vmatpush.bf16.msra.mxu0 0
      %184 = vmatpush.bf16.msra.mxu0 0
      %185 = vmatpush.bf16.msra.mxu0 %v172
      %186 = vmatpush.bf16.msra.mxu0 %v171
      %187 = vmatmul.bf16.gmra.mxu0 %v177
      %v188 = vpop.f32.mrf.mxu0
      %v189 = vadd.f32 %v161, %v188
      %v190 = vpop.f32.mrf.mxu0
      %v191 = vadd.f32 %v161, %v190
      %192 = vdwg.mxu0
      %v193 = vpack.c.bf16 %v189, %v189
      %v194 = vpack.c.bf16 %v191, %v191
      %195 = vst [vmem:[#allocation2] sm:$0xf] %v193
      %196 = vst [vmem:[#allocation2 + $0x4] sm:$0xf] %v194
      %vm197 = vcmask 7168
      %198 = vst.msk [vmem:[#allocation3] sm:$0xff] %vm197, -inf
      %199 = vst.msk [vmem:[#allocation3 + $0x8] sm:$0xff] %vm197, -inf
      %200 = vst.msk [vmem:[#allocation4] sm:$0xff] %vm197, 0.0
      %201 = vst.msk [vmem:[#allocation4 + $0x8] sm:$0xff] %vm197, 0.0
      %202 = vst [vmem:[#allocation5] sm:$0xff] 0.0
      %203 = vst [vmem:[#allocation5 + $0x8] sm:$0xff] 0.0
    $region73: #{tpu_custom_call.1} parent=1 // pred_fallthru
      _
    %v204 = vld [vmem:[#allocation9] sm:$0xff]
    %v205 = vld [vmem:[#allocation9 + $0x8] sm:$0xff]
    %v206 = vpack.c.bf16 %v205, %v204
    %v207 = vld [vmem:[#allocation15] sm:$0xf]
    %v208 = vld [vmem:[#allocation15 + $0x4] sm:$0xf]
    %v209 = vld [vmem:[#allocation15 + $0x8] sm:$0xf]
    %v210 = vld [vmem:[#allocation15 + $0xc] sm:$0xf]
    %v211 = vld [vmem:[%s7] sm:$0x1]
    %v213 = vperm.slane %v211, 0
    %v219 = vunpack.c.l.b16 %v207
    %v220 = vunpack.c.l.b16 %v208
    %v221 = vunpack.c.l.b16 %v209
    %v222 = vunpack.c.l.b16 %v210
    %v223 = vpack.c.b16 %v220, %v219
    %v224 = vpack.c.b16 %v222, %v221
    %vm227 = vcmask 261120
    %v229 = vsel %vm227, %v206, 0
    %231 = vmatpush.bf16.msra.mxu0 0
    %232 = vmatpush.bf16.msra.mxu0 0
    %233 = vmatpush.bf16.msra.mxu0 0
    %234 = vmatpush.bf16.msra.mxu0 0
    %235 = vmatpush.bf16.msra.mxu0 0
    %236 = vmatpush.bf16.msra.mxu0 0
    %237 = vmatpush.bf16.msra.mxu0 %v224
    %238 = vmatpush.bf16.msra.mxu0 %v223
    %239 = vmatmul.bf16.gmra.mxu0 %v229
    %v240 = vpop.f32.mrf.mxu0
    %v241 = vadd.f32 %v213, %v240
    %v242 = vpop.f32.mrf.mxu0
    %v243 = vadd.f32 %v213, %v242
    %244 = vdwg.mxu0
    %v245 = vpack.c.bf16 %v241, %v241
    %v246 = vpack.c.bf16 %v243, %v243
    %v247 = vld [vmem:[#allocation11] sm:$0xff]
    %v248 = vld [vmem:[#allocation11 + $0x8] sm:$0xff]
    %v249 = vpack.c.bf16 %v248, %v247
    %v250 = vld [vmem:[#allocation17] sm:$0xf]
    %v251 = vld [vmem:[#allocation17 + $0x4] sm:$0xf]
    %v252 = vld [vmem:[#allocation17 + $0x8] sm:$0xf]
    %v253 = vld [vmem:[#allocation17 + $0xc] sm:$0xf]
    %v254 = vld [vmem:[%s9] sm:$0x1]
    %v256 = vperm.slane %v254, 0
    %v262 = vunpack.c.l.b16 %v250
    %v263 = vunpack.c.l.b16 %v251
    %v264 = vunpack.c.l.b16 %v252
    %v265 = vunpack.c.l.b16 %v253
    %v266 = vpack.c.b16 %v263, %v262
    %v267 = vpack.c.b16 %v265, %v264
    %v271 = vsel %vm227, %v249, 0
    %273 = vmatpush.bf16.msra.mxu0 0
    %274 = vmatpush.bf16.msra.mxu0 0
    %275 = vmatpush.bf16.msra.mxu0 0
    %276 = vmatpush.bf16.msra.mxu0 0
    %277 = vmatpush.bf16.msra.mxu0 0
    %278 = vmatpush.bf16.msra.mxu0 0
    %279 = vmatpush.bf16.msra.mxu0 %v267
    %280 = vmatpush.bf16.msra.mxu0 %v266
    %281 = vmatmul.bf16.gmra.mxu0 %v271
    %v282 = vpop.f32.mrf.mxu0
    %v283 = vadd.f32 %v256, %v282
    %v284 = vpop.f32.mrf.mxu0
    %v285 = vadd.f32 %v256, %v284
    %286 = vdwg.mxu0
    %v287 = vpack.c.bf16 %v283, %v283
    %v288 = vpack.c.bf16 %v285, %v285
    %v289 = vld [vmem:[#allocation2] sm:$0xf]
    %v290 = vld [vmem:[#allocation2 + $0x4] sm:$0xf]
    %291 = vmatpush.bf16.xpose.msra.mxu0 0
    %292 = vmatpush.bf16.xpose.msra.mxu0 0
    %293 = vmatpush.bf16.xpose.msra.mxu0 0
    %294 = vmatpush.bf16.xpose.msra.mxu0 0
    %295 = vmatpush.bf16.xpose.msra.mxu0 0
    %296 = vmatpush.bf16.xpose.msra.mxu0 0
    %297 = vmatpush.bf16.xpose.msra.mxu0 0
    %298 = vmatpush.bf16.xpose.msra.mxu0 %v245
    %299 = vmatmul.bf16.gmra.mxu0 %v289
    %v300 = vpop.f32.mrf.mxu0
    %v301 = vadd.f32 0.0, %v300
    %v302 = vpop.f32.mrf.mxu0
    %303 = vdwg.mxu0
    %304 = vmatpush.bf16.xpose.msra.mxu0 0
    %305 = vmatpush.bf16.xpose.msra.mxu0 0
    %306 = vmatpush.bf16.xpose.msra.mxu0 0
    %307 = vmatpush.bf16.xpose.msra.mxu0 0
    %308 = vmatpush.bf16.xpose.msra.mxu0 0
    %309 = vmatpush.bf16.xpose.msra.mxu0 0
    %310 = vmatpush.bf16.xpose.msra.mxu0 0
    %311 = vmatpush.bf16.xpose.msra.mxu0 %v246
    %312 = vmatmul.bf16.gmra.mxu0 %v290
    %v313 = vpop.f32.mrf.mxu0
    %v314 = vadd.f32 0.0, %v313
    %v315 = vpop.f32.mrf.mxu0
    %316 = vdwg.mxu0
    %v317 = vld [vmem:[#allocation12] sm:$0x3]
    %v318 = vld [vmem:[#allocation12 + $0x2] sm:$0x3]
    %vm319 = vnez %v317
    %vm320 = vnez %v318
    %v321 = vsel %vm319, 16843009, 0
    %v322 = vsel %vm320, 16843009, 0
    %v323 = vunpack.c.0.s8 %v321
    %v324 = vunpack.c.0.s8 %v322
    %vm325 = vcmp.ne.s32.totalorder %v323, 0
    %vm326 = vcmp.ne.s32.totalorder %v324, 0
    %v327 = vsel %vm325, -1e+09, %v301
    %v328 = vsel %vm326, -1e+09, %v314
    %v329 = vld [vmem:[#allocation3] sm:$0xff]
    %v330 = vld [vmem:[#allocation3 + $0x8] sm:$0xff]
    %vm331 = vcmask 64512
    %v332 = vsel %vm331, %v327, -inf
    %333 = vmax.xlane.f32.xlu0 %v332
    %v334 = vpop.xlane.xlu0 %333
    %v335 = vsel %vm331, %v328, -inf
    %336 = vmax.xlane.f32.xlu0 %v335
    %v337 = vpop.xlane.xlu0 %336
    %v338 = vmax.f32 %v329, %v334
    %v339 = vmax.f32 %v330, %v337
    %v340 = vsub.f32 %v329, %v338
    %v341 = vsub.f32 %v330, %v339
    %v342 = vmul.f32 %v340, 1.442695
    %v343 = vpow.pop %v342
    %v344 = vmul.f32 %v341, 1.442695
    %v345 = vpow.pop %v344
    %347 = vset.pattern.permute.xlu0 0
    %348 = vperm.xlu0 %347, %v338
    %v349 = vpop.permute.xlu0 %348
    %352 = vset.pattern.permute.xlu0 0
    %353 = vperm.xlu0 %352, %v339
    %v354 = vpop.permute.xlu0 %353
    %v356 = vsub.f32 %v327, %v349
    %v357 = vsub.f32 %v328, %v354
    %v358 = vmul.f32 %v356, 1.442695
    %v359 = vpow.pop %v358
    %v360 = vmul.f32 %v357, 1.442695
    %v361 = vpow.pop %v360
    %v362 = vld [vmem:[#allocation4] sm:$0xff]
    %v363 = vld [vmem:[#allocation4 + $0x8] sm:$0xff]
    %v364 = vmul.f32 %v343, %v362
    %v365 = vmul.f32 %v345, %v363
    %v366 = vsel %vm331, %v359, 0.0
    %367 = vadd.xlane.f32.xlu0 %v366
    %v368 = vpop.xlane.xlu0 %367
    %v369 = vsel %vm331, %v361, 0.0
    %370 = vadd.xlane.f32.xlu0 %v369
    %v371 = vpop.xlane.xlu0 %370
    %v372 = vadd.f32 %v364, %v368
    %v373 = vadd.f32 %v365, %v371
    %vm374 = vcmask 7168
    %375 = vst.msk [vmem:[#allocation4] sm:$0xff] %vm374, %v372
    %376 = vst.msk [vmem:[#allocation4 + $0x8] sm:$0xff] %vm374, %v373
    %v377 = vld [vmem:[#allocation5] sm:$0xff]
    %v378 = vld [vmem:[#allocation5 + $0x8] sm:$0xff]
    %380 = vset.pattern.permute.xlu0 0
    %381 = vperm.xlu0 %380, %v343
    %v382 = vpop.permute.xlu0 %381
    %385 = vset.pattern.permute.xlu0 0
    %386 = vperm.xlu0 %385, %v345
    %v387 = vpop.permute.xlu0 %386
    %v389 = vmul.f32 %v382, %v377
    %v390 = vmul.f32 %v387, %v378
    %v391 = vpack.c.bf16 %v359, %v359
    %v392 = vpack.c.bf16 %v361, %v361
    %v394 = vsel %vm331, %v391, 0
    %vm396 = vcmask 1043456
    %v398 = vsel %vm396, %v287, 0
    %400 = vmatpush.bf16.msra.mxu0 0
    %401 = vmatpush.bf16.msra.mxu0 0
    %402 = vmatpush.bf16.msra.mxu0 0
    %403 = vmatpush.bf16.msra.mxu0 0
    %404 = vmatpush.bf16.msra.mxu0 0
    %405 = vmatpush.bf16.msra.mxu0 0
    %406 = vmatpush.bf16.msra.mxu0 0
    %407 = vmatpush.bf16.msra.mxu0 %v398
    %408 = vmatmul.bf16.gmra.mxu0 %v394
    %v409 = vpop.f32.mrf.mxu0
    %v410 = vadd.f32 0.0, %v409
    %v411 = vpop.f32.mrf.mxu0
    %412 = vdwg.mxu0
    %v414 = vsel %vm331, %v392, 0
    %v417 = vsel %vm396, %v288, 0
    %419 = vmatpush.bf16.msra.mxu0 0
    %420 = vmatpush.bf16.msra.mxu0 0
    %421 = vmatpush.bf16.msra.mxu0 0
    %422 = vmatpush.bf16.msra.mxu0 0
    %423 = vmatpush.bf16.msra.mxu0 0
    %424 = vmatpush.bf16.msra.mxu0 0
    %425 = vmatpush.bf16.msra.mxu0 0
    %426 = vmatpush.bf16.msra.mxu0 %v417
    %427 = vmatmul.bf16.gmra.mxu0 %v414
    %v428 = vpop.f32.mrf.mxu0
    %v429 = vadd.f32 0.0, %v428
    %v430 = vpop.f32.mrf.mxu0
    %431 = vdwg.mxu0
    %v432 = vadd.f32 %v389, %v410
    %v433 = vadd.f32 %v390, %v429
    %434 = vst [vmem:[#allocation5] sm:$0xff] %v432
    %435 = vst [vmem:[#allocation5 + $0x8] sm:$0xff] %v433
    %436 = vst.msk [vmem:[#allocation3] sm:$0xff] %vm374, %v338
    %437 = vst.msk [vmem:[#allocation3 + $0x8] sm:$0xff] %vm374, %v339
    // Predicated region
    $region74: #{tpu_custom_call.1} parent=1 // pred_check
      %p438 = pneg %p148
    $region75: #{tpu_custom_call.1} parent=1 // pred_check_branch
      %440 = sbr.rel (%p438) target = $region77
    $region76: #{tpu_custom_call.1} parent=1 // pred_region
      %v441 = vld [vmem:[#allocation5] sm:$0xff]
      %v442 = vld [vmem:[#allocation5 + $0x8] sm:$0xff]
      %v443 = vld [vmem:[#allocation4] sm:$0xff]
      %v444 = vld [vmem:[#allocation4 + $0x8] sm:$0xff]
      %v445 = vrcp.pop %v443
      %v446 = vrcp.pop %v444
      %448 = vset.pattern.permute.xlu0 0
      %449 = vperm.xlu0 %448, %v445
      %v450 = vpop.permute.xlu0 %449
      %453 = vset.pattern.permute.xlu0 0
      %454 = vperm.xlu0 %453, %v446
      %v455 = vpop.permute.xlu0 %454
      %v457 = vmul.f32 %v441, %v450
      %v458 = vmul.f32 %v442, %v455
      %459 = vst [vmem:[#allocation18] sm:$0xff] %v457
      %460 = vst [vmem:[#allocation18 + $0x8] sm:$0xff] %v458
    $region77: #{tpu_custom_call.1} parent=1 // pred_fallthru
      _
    // Predicated region
    $region78: #{tpu_custom_call.1} parent=1 // pred_check
      _
    $region79: #{tpu_custom_call.1} parent=1 // pred_check_branch
      %462 = sbr.rel (0) target = $region81
    $region80: #{tpu_custom_call.1} parent=1 // pred_region
      %464 = vsyncadd [#allocation8], 0
      %s465 = sshll.u32 [#allocation18], 4
      %s466 = int_to_ptr.vmem [resolvable:$true] %s465
      %s467 = sshll.u32 %s10, 4
      %s468 = int_to_ptr.hbm [resolvable:$true] %s467
      %473 = dma.vmem_to_hbm [thread:$0]  %s466, 256, %s468, [#allocation8], 128, 128, 8
    $region81: #{tpu_custom_call.1} parent=1 // pred_fallthru
      _
    // Predicated region
    $region82: #{tpu_custom_call.1} parent=1 // pred_check
      _
    $region83: #{tpu_custom_call.1} parent=1 // pred_check_branch
      %475 = sbr.rel (0) target = $region85
    $region84: #{tpu_custom_call.1} parent=1 // pred_region
      %477 = dma.done [#allocation8], 256
    $region85: #{tpu_custom_call.1} parent=1 // pred_fallthru
      _
    %478 = vsyncpa [#allocation7], 1
    %479 = vsyncpa [#allocation10], 1
    %480 = vsyncpa [#allocation13], 1
    %481 = vsyncpa [#allocation16], 1
    %482 = vsyncpa [#allocation8], 1

</llo_original>
